<compile_context>
chip_gen: v7x
topology: tpu7x:2x2x1
jax: 0.10.0
libtpu: 0.0.40
codegen_flags: <defaults>
</compile_context>

<pallas_src>
import jax
import jax.numpy as jnp
from jax import lax
from jax.experimental import pallas as pl
from jax.experimental.pallas import tpu as pltpu


def _elu(x):
    # torch.nn.functional.elu with default alpha=1.0.  (The positive branch of
    # the where also evaluates exp; a discarded +inf there is benign.)
    return jnp.where(x > 0, x, jnp.exp(x) - 1.0)


def _mlp_tail(h1_pre, w2_ref, b2_ref, w3_ref, b3_ref):
    """Layers 2/3 + sigmoid, everything batch-on-lane: (features, tb) tiles."""
    h1 = _elu(h1_pre)                                                    # (16, tb)
    h2 = _elu(jnp.dot(w2_ref[...], h1,
                      preferred_element_type=jnp.float32) + b2_ref[...])  # (8, tb)
    h3 = jnp.dot(w3_ref[...], h2,
                 preferred_element_type=jnp.float32) + b3_ref[...]        # (1, tb)
    # Exact sigmoid via a single EUP tanh push (replaces exp + approx recip).
    return 0.5 * jnp.tanh(0.5 * h3) + 0.5


def mlp_kernel_rowmajor(x_ref, w1_ref, b1_ref, w2_ref, b2_ref, w3_ref, b3_ref,
                        out_ref):
    # x tile is (tb, 9): the module's natural batch-major layout.  The
    # batch->lane move is folded into the first MXU contraction (NT form); all
    # later VPU/EUP work and the output store are full lane width.
    # TODO(synk): verify via pl.lower_as_mlir whether this NT dot_general emits
    # a tb-proportional XLU relayout of x; if it binds on v6e/v7x, feed the
    # producer's data through net_forward_colmajor instead.
    h1_pre = lax.dot_general(
        w1_ref[...], x_ref[...], (((1,), (1,)), ((), ())),
        preferred_element_type=jnp.float32) + b1_ref[...]               # (16, tb)
    out_ref[...] = _mlp_tail(h1_pre, w2_ref, b2_ref, w3_ref, b3_ref)


def mlp_kernel_colmajor(xT_ref, w1_ref, b1_ref, w2_ref, b2_ref, w3_ref, b3_ref,
                        out_ref):
    # x tile is already (9, tb): zero relayout, and the x VMEM buffer only
    # sublane-pads 9->16 (64*tb B) instead of lane-padding 9->128 (512*tb B).
    h1_pre = jnp.dot(xT_ref[...].T if False else w1_ref[...] @ xT_ref[...],
                     jnp.float32(1.0)) if False else (
        jnp.dot(w1_ref[...], xT_ref[...],
                preferred_element_type=jnp.float32) + b1_ref[...])       # (16, tb)
    out_ref[...] = _mlp_tail(h1_pre, w2_ref, b2_ref, w3_ref, b3_ref)


def _forward(x, params, block_b, col_major):
    w1, b1, w2, b2, w3, b3 = params
    batch = x.shape[1] if col_major else x.shape[0]

    if batch <= block_b:
        tb = batch                     # single tile: block == full array dims
    else:
        assert block_b % 128 == 0, "batch tile must be a multiple of 128 lanes"
        tb = block_b
    grid = (pl.cdiv(batch, tb),)       # partial final block handled by OOB masking

    # --- VMEM budget with the real padded layouts ---------------------------
    #   row-major x tile (tb, 9) f32 -> lane-padded  (tb,128) = 512*tb B / buffer
    #   col-major x tile (9, tb) f32 -> sublane-pad  (16, tb) =  64*tb B / buffer
    #   out tile  (1, tb) f32        -> sublane-pad  (8,  tb) =  32*tb B / buffer
    #   intermediates (h1/h2/h3 + relayout copy + elu temps)  ~ 256-512*tb B
    # Inputs/outputs are double-buffered by the BlockSpec pipeline.
    x_buf = (64 if col_major else 512) * tb
    scratch = (256 if col_major else 512) * tb
    vmem_limit = 2 * (x_buf + 32 * tb) + scratch + (4 << 20)
    vmem_limit = int(min(max(vmem_limit, 32 << 20), 110 << 20))

    # Advisory cost: 560 flops, ~26 transcendentals, 40 B of HBM per row.
    cost = pl.CostEstimate(flops=560 * batch, transcendentals=26 * batch,
                           bytes_accessed=40 * batch)

    const = lambda i: (0, 0)           # weights/biases: VMEM-resident across steps
    if col_major:
        x_spec = pl.BlockSpec((9, tb), lambda i: (0, i))
        kernel = mlp_kernel_colmajor
    else:
        x_spec = pl.BlockSpec((tb, 9), lambda i: (i, 0))
        kernel = mlp_kernel_rowmajor

    out = pl.pallas_call(
        kernel,
        out_shape=jax.ShapeDtypeStruct((1, batch), jnp.float32),
        grid=grid,
        in_specs=[
            x_spec,
            pl.BlockSpec((16, 9), const),   # fc1.weight (out, in)
            pl.BlockSpec((16, 1), const),   # fc1.bias (column vector)
            pl.BlockSpec((8, 16), const),   # fc2.weight
            pl.BlockSpec((8, 1), const),    # fc2.bias
            pl.BlockSpec((1, 8), const),    # fc3.weight
            pl.BlockSpec((1, 1), const),    # fc3.bias
        ],
        out_specs=pl.BlockSpec((1, tb), lambda i: (0, i)),
        compiler_params=pltpu.CompilerParams(
            dimension_semantics=("parallel",),     # megacore / v7x dual-TC split
            vmem_limit_bytes=vmem_limit),
        cost_estimate=cost,
    )(x, w1, b1.reshape(16, 1), w2, b2.reshape(8, 1), w3, b3.reshape(1, 1))

    # (1, batch) -> (batch, 1); the transpose of a width-1 axis is layout-free.
    return out.T


def net_forward(x, params, block_b=16384):
    """x: (batch, 9) float32 (the nn.Module contract) -> (batch, 1) sigmoid probs.

    Tile guidance: v5e/v6e block_b in [16384, 32768]; v7x keep block_b in
    [8192, 16384] (64 MiB VMEM/TC) and ensure grid length >= 2 so both
    TensorCores get work.
    """
    return _forward(x, params, block_b, col_major=False)


def net_forward_colmajor(xT, params, block_b=65536):
    """xT: (9, batch) feature-major input -> (batch, 1).

    Preferred when the producer can supply feature-major data: removes the only
    batch-proportional relayout in the kernel and shrinks the x VMEM buffer 8x,
    so much larger batch tiles fit.
    """
    return _forward(xT, params, block_b, col_major=True)


# ------------------------- init / reference (spec) -------------------------

def _kaiming_uniform(key, shape, nonlinearity="leaky_relu"):
    # PyTorch init.kaiming_uniform_(w): bound = gain * sqrt(3 / fan_in), w is (out, in)
    fan_in = shape[1]
    gain = {"leaky_relu": jnp.sqrt(2.0), "sigmoid": 1.0}[nonlinearity]
    bound = gain * jnp.sqrt(3.0 / fan_in)
    return jax.random.uniform(key, shape, jnp.float32, -bound, bound)


def _bias_init(key, out_features, fan_in):
    # PyTorch nn.Linear default bias init: U(-1/sqrt(fan_in), 1/sqrt(fan_in))
    bound = 1.0 / jnp.sqrt(fan_in)
    return jax.random.uniform(key, (out_features,), jnp.float32, -bound, bound)


def init_params(key):
    k1, k2, k3, k4, k5, k6 = jax.random.split(key, 6)
    w1 = _kaiming_uniform(k1, (16, 9))                          # fc1.weight
    b1 = _bias_init(k2, 16, 9)                                  # fc1.bias
    w2 = _kaiming_uniform(k3, (8, 16))                          # fc2.weight
    b2 = _bias_init(k4, 8, 16)                                  # fc2.bias
    w3 = _kaiming_uniform(k5, (1, 8), nonlinearity="sigmoid")   # fc3.weight
    b3 = _bias_init(k6, 1, 8)                                   # fc3.bias
    return w1, b1, w2, b2, w3, b3


def net_reference(x, params):
    w1, b1, w2, b2, w3, b3 = params
    hp = lax.Precision.HIGHEST
    h = jax.nn.elu(jnp.dot(x, w1.T, precision=hp) + b1)
    h = jax.nn.elu(jnp.dot(h, w2.T, precision=hp) + b2)
    return jax.nn.sigmoid(jnp.dot(h, w3.T, precision=hp) + b3)


if __name__ == "__main__":
    key = jax.random.PRNGKey(0)
    pkey, xkey = jax.random.split(key)
    params = init_params(pkey)

    # Small shapes consistent with the module (9 input features).  block_b=384
    # exercises the multi-step pipelined grid AND a partial (OOB-masked) final
    # block: grid = cdiv(1000, 384) = 3.
    batch = 1000
    x = jax.random.normal(xkey, (batch, 9), dtype=jnp.float32)

    out = net_forward(x, params, block_b=384)
    jax.block_until_ready(out)
    ref = net_reference(x, params)
    assert out.shape == (batch, 1)
    assert jnp.allclose(out, ref, atol=1e-3, rtol=1e-3), \
        float(jnp.max(jnp.abs(out - ref)))

    # Feature-major producer path (no in-kernel batch relayout at all).
    out_cm = net_forward_colmajor(jnp.asarray(x.T), params, block_b=384)
    jax.block_until_ready(out_cm)
    assert out_cm.shape == (batch, 1)
    assert jnp.allclose(out_cm, ref, atol=1e-3, rtol=1e-3)

    # Tiny-batch / single-tile path (block shapes == full array dims).
    x_small = jax.random.normal(jax.random.PRNGKey(1), (8, 9), dtype=jnp.float32)
    out_small = net_forward(x_small, params)
    jax.block_until_ready(out_small)
    ref_small = net_reference(x_small, params)
    assert out_small.shape == (8, 1)
    assert jnp.allclose(out_small, ref_small, atol=1e-3, rtol=1e-3)

    print("KERNEL_OK")
</pallas_src>

<mosaic_0001>
module attributes {stable_mosaic.version = 11 : i64} {
  func.func @mlp_kernel_rowmajor(%arg0: i32, %arg1: memref<384x9xf32, #tpu.memory_space<vmem>>, %arg2: memref<16x9xf32, #tpu.memory_space<vmem>>, %arg3: memref<16x1xf32, #tpu.memory_space<vmem>>, %arg4: memref<8x16xf32, #tpu.memory_space<vmem>>, %arg5: memref<8x1xf32, #tpu.memory_space<vmem>>, %arg6: memref<1x8xf32, #tpu.memory_space<vmem>>, %arg7: memref<1x1xf32, #tpu.memory_space<vmem>>, %arg8: memref<1x384xf32, #tpu.memory_space<vmem>>) attributes {dimension_semantics = [#tpu.dimension_semantics<parallel>], iteration_bounds = array<i64: 3>, scalar_prefetch = 0 : i64, scratch_operands = 0 : i64, tpu.core_type = #tpu.core_type<tc>, window_params = [{transform_indices = @transform_0, window_bounds = array<i64: 384, 9>}, {pipeline_mode = #tpu.pipeline_mode<synchronous>, transform_indices = @transform_1, window_bounds = array<i64: 16, 9>}, {pipeline_mode = #tpu.pipeline_mode<synchronous>, transform_indices = @transform_2, window_bounds = array<i64: 16, 1>}, {pipeline_mode = #tpu.pipeline_mode<synchronous>, transform_indices = @transform_3, window_bounds = array<i64: 8, 16>}, {pipeline_mode = #tpu.pipeline_mode<synchronous>, transform_indices = @transform_4, window_bounds = array<i64: 8, 1>}, {pipeline_mode = #tpu.pipeline_mode<synchronous>, transform_indices = @transform_5, window_bounds = array<i64: 1, 8>}, {pipeline_mode = #tpu.pipeline_mode<synchronous>, transform_indices = @transform_6, window_bounds = array<i64: 1, 1>}, {transform_indices = @transform_7, window_bounds = array<i64: 1, 384>}]} {
    %c0 = arith.constant 0 : index
    %c0_0 = arith.constant 0 : index
    %0 = vector.load %arg2[%c0, %c0_0] : memref<16x9xf32, #tpu.memory_space<vmem>>, vector<16x9xf32>
    %c0_1 = arith.constant 0 : index
    %c0_2 = arith.constant 0 : index
    %1 = vector.load %arg1[%c0_1, %c0_2] : memref<384x9xf32, #tpu.memory_space<vmem>>, vector<384x9xf32>
    %cst = arith.constant dense<0.000000e+00> : vector<16x384xf32>
    %2 = tpu.matmul %0, %1, %cst {dimension_numbers = #tpu.dot_dimension_numbers<[1], [1], [0], [0], [0, 0, 1, 0], [], []>} : vector<16x9xf32>, vector<384x9xf32>, vector<16x384xf32> -> vector<16x384xf32>
    %c0_3 = arith.constant 0 : index
    %c0_4 = arith.constant 0 : index
    %3 = vector.load %arg3[%c0_3, %c0_4] : memref<16x1xf32, #tpu.memory_space<vmem>>, vector<16x1xf32>
    %4 = vector.broadcast %3 : vector<16x1xf32> to vector<16x384xf32>
    %5 = arith.addf %2, %4 : vector<16x384xf32>
    %cst_5 = arith.constant 0.000000e+00 : f32
    %6 = vector.broadcast %cst_5 : f32 to vector<16x384xf32>
    %7 = arith.cmpf ogt, %5, %6 : vector<16x384xf32>
    %8 = math.exp %5 : vector<16x384xf32>
    %cst_6 = arith.constant 1.000000e+00 : f32
    %9 = vector.broadcast %cst_6 : f32 to vector<16x384xf32>
    %10 = arith.subf %8, %9 : vector<16x384xf32>
    %11 = arith.select %7, %5, %10 : vector<16x384xi1>, vector<16x384xf32>
    %c0_7 = arith.constant 0 : index
    %c0_8 = arith.constant 0 : index
    %12 = vector.load %arg4[%c0_7, %c0_8] : memref<8x16xf32, #tpu.memory_space<vmem>>, vector<8x16xf32>
    %cst_9 = arith.constant dense<0.000000e+00> : vector<8x384xf32>
    %13 = tpu.matmul %12, %11, %cst_9 {dimension_numbers = #tpu.dot_dimension_numbers<[1], [0], [0], [1], [0, 0, 1, 1], [], []>} : vector<8x16xf32>, vector<16x384xf32>, vector<8x384xf32> -> vector<8x384xf32>
    %c0_10 = arith.constant 0 : index
    %c0_11 = arith.constant 0 : index
    %14 = vector.load %arg5[%c0_10, %c0_11] : memref<8x1xf32, #tpu.memory_space<vmem>>, vector<8x1xf32>
    %15 = vector.broadcast %14 : vector<8x1xf32> to vector<8x384xf32>
    %16 = arith.addf %13, %15 : vector<8x384xf32>
    %cst_12 = arith.constant 0.000000e+00 : f32
    %17 = vector.broadcast %cst_12 : f32 to vector<8x384xf32>
    %18 = arith.cmpf ogt, %16, %17 : vector<8x384xf32>
    %19 = math.exp %16 : vector<8x384xf32>
    %cst_13 = arith.constant 1.000000e+00 : f32
    %20 = vector.broadcast %cst_13 : f32 to vector<8x384xf32>
    %21 = arith.subf %19, %20 : vector<8x384xf32>
    %22 = arith.select %18, %16, %21 : vector<8x384xi1>, vector<8x384xf32>
    %c0_14 = arith.constant 0 : index
    %c0_15 = arith.constant 0 : index
    %23 = vector.load %arg6[%c0_14, %c0_15] : memref<1x8xf32, #tpu.memory_space<vmem>>, vector<1x8xf32>
    %cst_16 = arith.constant dense<0.000000e+00> : vector<1x384xf32>
    %24 = tpu.matmul %23, %22, %cst_16 {dimension_numbers = #tpu.dot_dimension_numbers<[1], [0], [0], [1], [0, 0, 1, 1], [], []>} : vector<1x8xf32>, vector<8x384xf32>, vector<1x384xf32> -> vector<1x384xf32>
    %c0_17 = arith.constant 0 : index
    %c0_18 = arith.constant 0 : index
    %25 = vector.load %arg7[%c0_17, %c0_18] : memref<1x1xf32, #tpu.memory_space<vmem>>, vector<1x1xf32>
    %26 = vector.broadcast %25 : vector<1x1xf32> to vector<1x384xf32>
    %27 = arith.addf %24, %26 : vector<1x384xf32>
    %cst_19 = arith.constant 5.000000e-01 : f32
    %28 = vector.broadcast %cst_19 : f32 to vector<1x384xf32>
    %29 = arith.mulf %28, %27 : vector<1x384xf32>
    %30 = math.tanh %29 : vector<1x384xf32>
    %cst_20 = arith.constant 5.000000e-01 : f32
    %31 = vector.broadcast %cst_20 : f32 to vector<1x384xf32>
    %32 = arith.mulf %31, %30 : vector<1x384xf32>
    %cst_21 = arith.constant 5.000000e-01 : f32
    %33 = vector.broadcast %cst_21 : f32 to vector<1x384xf32>
    %34 = arith.addf %32, %33 : vector<1x384xf32>
    %c0_22 = arith.constant 0 : index
    %c0_23 = arith.constant 0 : index
    %35 = vector.load %arg8[%c0_22, %c0_23] : memref<1x384xf32, #tpu.memory_space<vmem>>, vector<1x384xf32>
    tpu.vector_store %arg8[%c0_22, %c0_23], %34 {strides = array<i32>} : memref<1x384xf32, #tpu.memory_space<vmem>>, vector<1x384xf32>,
    return
  }
  func.func @transform_0(%arg0: i32) -> (i32, i32) {
    %c0_i32 = arith.constant 0 : i32
    %c0_i32_0 = arith.constant 0 : i32
    return %arg0, %c0_i32 : i32, i32
  }
  func.func @transform_1(%arg0: i32) -> (i32, i32) {
    %c0_i32 = arith.constant 0 : i32
    %c0_i32_0 = arith.constant 0 : i32
    %c0_i32_1 = arith.constant 0 : i32
    return %c0_i32, %c0_i32_0 : i32, i32
  }
  func.func @transform_2(%arg0: i32) -> (i32, i32) {
    %c0_i32 = arith.constant 0 : i32
    %c0_i32_0 = arith.constant 0 : i32
    %c0_i32_1 = arith.constant 0 : i32
    return %c0_i32, %c0_i32_0 : i32, i32
  }
  func.func @transform_3(%arg0: i32) -> (i32, i32) {
    %c0_i32 = arith.constant 0 : i32
    %c0_i32_0 = arith.constant 0 : i32
    %c0_i32_1 = arith.constant 0 : i32
    return %c0_i32, %c0_i32_0 : i32, i32
  }
  func.func @transform_4(%arg0: i32) -> (i32, i32) {
    %c0_i32 = arith.constant 0 : i32
    %c0_i32_0 = arith.constant 0 : i32
    %c0_i32_1 = arith.constant 0 : i32
    return %c0_i32, %c0_i32_0 : i32, i32
  }
  func.func @transform_5(%arg0: i32) -> (i32, i32) {
    %c0_i32 = arith.constant 0 : i32
    %c0_i32_0 = arith.constant 0 : i32
    %c0_i32_1 = arith.constant 0 : i32
    return %c0_i32, %c0_i32_0 : i32, i32
  }
  func.func @transform_6(%arg0: i32) -> (i32, i32) {
    %c0_i32 = arith.constant 0 : i32
    %c0_i32_0 = arith.constant 0 : i32
    %c0_i32_1 = arith.constant 0 : i32
    return %c0_i32, %c0_i32_0 : i32, i32
  }
  func.func @transform_7(%arg0: i32) -> (i32, i32) {
    %c0_i32 = arith.constant 0 : i32
    %c0_i32_0 = arith.constant 0 : i32
    return %c0_i32, %arg0 : i32, i32
  }
}

</mosaic_0001>

<llo_original>
// kernel: tpu_custom_call.1
$region0: #{tpu_custom_call.1}
  #allocation0 [shape = 'u32[]', space=smem, size = 0x4, offset = 0x4, fixed_abs, tag = 'smem constant byte address 0x4 - core index']
  #allocation1 [shape = 'u32[144,128]{1,0:T(1,128)}', space=vmem, size = 0x12000, scoped, tag = 'internal scratch']
  #allocation2 [shape = 'f32[1,1]{1,0:T(1,128)S(1)}', space=vmem, size = 0x200, scoped, tag = 'scoped memory for tpu_custom_call.1']
  %s0 = inlined_call_operand.vmem [shape: f32[1000,9], index: 0, kind: input, shape index: {}]
  %s1 = inlined_call_operand.vmem [shape: f32[16,9], index: 1, kind: input, shape index: {}]
  %s2 = inlined_call_operand.vmem [shape: f32[16,1], index: 2, kind: input, shape index: {}]
  %s3 = inlined_call_operand.vmem [shape: f32[8,16], index: 3, kind: input, shape index: {}]
  %s4 = inlined_call_operand.vmem [shape: f32[8,1], index: 4, kind: input, shape index: {}]
  %s5 = inlined_call_operand.vmem [shape: f32[1,8], index: 5, kind: input, shape index: {}]
  %s6 = inlined_call_operand.<no memory space> [shape: f32[1,1], index: 6, kind: input, shape index: {}]
  %s7 = inlined_call_operand.hbm [shape: f32[1,1000], index: 7, kind: output, shape index: {}]
  %s8 = sld [smem:[#allocation0]]
  $region61: #{tpu_custom_call.1} parent=0
    _
  %s10 = ssub.s32 1, %s8
  %s11 = scalar_select 0, %s10, %s8
  %v12 = vstv %s6
  %13 = vst [vmem:[#allocation2] sm:$0x1] %v12
  $region1: #{tpu_custom_call.1} parent=0
    #allocation3 [shape = 'u8[3072]{0}', space=vmem, size = 0xc00, scoped, tag = 'output window, operand 0']
    #allocation4 [shape = 's32[2]{0}', space=sflag, size = 0x8, scoped, tag = 'scoped memory for tpu_custom_call.1']
    %14 = vsyncpa [#allocation4], 0
    %s15 = scalar_lea.sflag [#allocation4], 1
    %16 = vsyncpa %s15, 0
    loop: start=0, step=1, limit=5
    $region2: #{tpu_custom_call.1} parent=1 // loop_pre_header
      _
    $region3: #{tpu_custom_call.1} parent=1 // loop_header
      %s18 = sphi 0, %s22
      %p19 = scmp.ge.s32.totalorder %s18, 5
      %s28 = sphi 0, %s30
      %s31 = sphi 0, %s28
      %s32 = sphi 0, %s31
      %s48 = sphi 0, %s32
      %s52 = sphi 0, %s52
      %s54 = sphi 0, %s52
      %s55 = sphi 0, %s54
      %s69 = sphi 0, %s55
      %s73 = sphi 0, %s73
      %s75 = sphi 0, %s73
      %s76 = sphi 0, %s75
      %s90 = sphi 0, %s76
      %s94 = sphi 0, %s94
      %s96 = sphi 0, %s94
      %s97 = sphi 0, %s96
      %s111 = sphi 0, %s97
      %s115 = sphi 0, %s115
      %s117 = sphi 0, %s115
      %s118 = sphi 0, %s117
      %s132 = sphi 0, %s118
      %s136 = sphi 0, %s136
      %s138 = sphi 0, %s136
      %s139 = sphi 0, %s138
      %s153 = sphi 0, %s139
      %s157 = sphi 0, %s157
      %s159 = sphi 0, %s157
      %s160 = sphi 0, %s159
      %s174 = sphi 0, %s160
      %s180 = sphi 0, %s182
      %s183 = sphi 0, %s180
      %s184 = sphi 0, %s183
      %s200 = sphi 0, %s184
    $region4: #{tpu_custom_call.1} parent=1 // loop_header_branch
      %21 = sbr.rel (%p19) target = $region8
    $region5: #{tpu_custom_call.1} parent=1 // loop_body
      %s23 = ssub.s32 %s18, 1
      %s24 = ssub.s32 %s18, 2
      %s25 = sadd.s32 %s18, 1
      %s26 = ssub.s32 %s18, %s25
      %p27 = scmp.eq.s32.totalorder %s26, 0
      %s29 = sadd.s32 %s28, 1
      %s30 = scalar_select %p27, %s28, %s29
      %p33 = pneg %p27
      %p34 = scmp.eq.s32.totalorder %s18, 2
      %p35 = por %p33, %p34
      %p36 = scmp.ne.s32.totalorder %s28, %s31
      %p37 = scmp.eq.s32.totalorder %s18, 0
      %p38 = por %p36, %p37
      %p39 = scmp.ne.s32.totalorder %s28, %s31
      %p40 = scmp.eq.s32.totalorder %s23, 2
      %p41 = por %p39, %p40
      %p42 = scmp.ne.s32.totalorder %s31, %s32
      %p43 = scmp.eq.s32.totalorder %s23, 0
      %p44 = por %p42, %p43
      %p45 = scmp.ne.s32.totalorder %s31, %s32
      %p46 = scmp.eq.s32.totalorder %s24, 2
      %p47 = por %p45, %p46
      %p49 = scmp.ne.s32.totalorder %s32, %s48
      %p50 = scmp.eq.s32.totalorder %s24, 0
      %p51 = por %p49, %p50
      %s53 = sadd.s32 %s52, 1
      %p56 = scmp.eq.s32.totalorder %s18, 2
      %p57 = scmp.ne.s32.totalorder %s52, %s54
      %p58 = scmp.eq.s32.totalorder %s18, 0
      %p59 = por %p57, %p58
      %p60 = scmp.ne.s32.totalorder %s52, %s54
      %p61 = scmp.eq.s32.totalorder %s23, 2
      %p62 = por %p60, %p61
      %p63 = scmp.ne.s32.totalorder %s54, %s55
      %p64 = scmp.eq.s32.totalorder %s23, 0
      %p65 = por %p63, %p64
      %p66 = scmp.ne.s32.totalorder %s54, %s55
      %p67 = scmp.eq.s32.totalorder %s24, 2
      %p68 = por %p66, %p67
      %p70 = scmp.ne.s32.totalorder %s55, %s69
      %p71 = scmp.eq.s32.totalorder %s24, 0
      %p72 = por %p70, %p71
      %s74 = sadd.s32 %s73, 1
      %p77 = scmp.eq.s32.totalorder %s18, 2
      %p78 = scmp.ne.s32.totalorder %s73, %s75
      %p79 = scmp.eq.s32.totalorder %s18, 0
      %p80 = por %p78, %p79
      %p81 = scmp.ne.s32.totalorder %s73, %s75
      %p82 = scmp.eq.s32.totalorder %s23, 2
      %p83 = por %p81, %p82
      %p84 = scmp.ne.s32.totalorder %s75, %s76
      %p85 = scmp.eq.s32.totalorder %s23, 0
      %p86 = por %p84, %p85
      %p87 = scmp.ne.s32.totalorder %s75, %s76
      %p88 = scmp.eq.s32.totalorder %s24, 2
      %p89 = por %p87, %p88
      %p91 = scmp.ne.s32.totalorder %s76, %s90
      %p92 = scmp.eq.s32.totalorder %s24, 0
      %p93 = por %p91, %p92
      %s95 = sadd.s32 %s94, 1
      %p98 = scmp.eq.s32.totalorder %s18, 2
      %p99 = scmp.ne.s32.totalorder %s94, %s96
      %p100 = scmp.eq.s32.totalorder %s18, 0
      %p101 = por %p99, %p100
      %p102 = scmp.ne.s32.totalorder %s94, %s96
      %p103 = scmp.eq.s32.totalorder %s23, 2
      %p104 = por %p102, %p103
      %p105 = scmp.ne.s32.totalorder %s96, %s97
      %p106 = scmp.eq.s32.totalorder %s23, 0
      %p107 = por %p105, %p106
      %p108 = scmp.ne.s32.totalorder %s96, %s97
      %p109 = scmp.eq.s32.totalorder %s24, 2
      %p110 = por %p108, %p109
      %p112 = scmp.ne.s32.totalorder %s97, %s111
      %p113 = scmp.eq.s32.totalorder %s24, 0
      %p114 = por %p112, %p113
      %s116 = sadd.s32 %s115, 1
      %p119 = scmp.eq.s32.totalorder %s18, 2
      %p120 = scmp.ne.s32.totalorder %s115, %s117
      %p121 = scmp.eq.s32.totalorder %s18, 0
      %p122 = por %p120, %p121
      %p123 = scmp.ne.s32.totalorder %s115, %s117
      %p124 = scmp.eq.s32.totalorder %s23, 2
      %p125 = por %p123, %p124
      %p126 = scmp.ne.s32.totalorder %s117, %s118
      %p127 = scmp.eq.s32.totalorder %s23, 0
      %p128 = por %p126, %p127
      %p129 = scmp.ne.s32.totalorder %s117, %s118
      %p130 = scmp.eq.s32.totalorder %s24, 2
      %p131 = por %p129, %p130
      %p133 = scmp.ne.s32.totalorder %s118, %s132
      %p134 = scmp.eq.s32.totalorder %s24, 0
      %p135 = por %p133, %p134
      %s137 = sadd.s32 %s136, 1
      %p140 = scmp.eq.s32.totalorder %s18, 2
      %p141 = scmp.ne.s32.totalorder %s136, %s138
      %p142 = scmp.eq.s32.totalorder %s18, 0
      %p143 = por %p141, %p142
      %p144 = scmp.ne.s32.totalorder %s136, %s138
      %p145 = scmp.eq.s32.totalorder %s23, 2
      %p146 = por %p144, %p145
      %p147 = scmp.ne.s32.totalorder %s138, %s139
      %p148 = scmp.eq.s32.totalorder %s23, 0
      %p149 = por %p147, %p148
      %p150 = scmp.ne.s32.totalorder %s138, %s139
      %p151 = scmp.eq.s32.totalorder %s24, 2
      %p152 = por %p150, %p151
      %p154 = scmp.ne.s32.totalorder %s139, %s153
      %p155 = scmp.eq.s32.totalorder %s24, 0
      %p156 = por %p154, %p155
      %s158 = sadd.s32 %s157, 1
      %p161 = scmp.eq.s32.totalorder %s18, 2
      %p162 = scmp.ne.s32.totalorder %s157, %s159
      %p163 = scmp.eq.s32.totalorder %s18, 0
      %p164 = por %p162, %p163
      %p165 = scmp.ne.s32.totalorder %s157, %s159
      %p166 = scmp.eq.s32.totalorder %s23, 2
      %p167 = por %p165, %p166
      %p168 = scmp.ne.s32.totalorder %s159, %s160
      %p169 = scmp.eq.s32.totalorder %s23, 0
      %p170 = por %p168, %p169
      %p171 = scmp.ne.s32.totalorder %s159, %s160
      %p172 = scmp.eq.s32.totalorder %s24, 2
      %p173 = por %p171, %p172
      %p175 = scmp.ne.s32.totalorder %s160, %s174
      %p176 = scmp.eq.s32.totalorder %s24, 0
      %p177 = por %p175, %p176
      %s178 = ssub.s32 %s18, %s25
      %p179 = scmp.eq.s32.totalorder %s178, 0
      %s181 = sadd.s32 %s180, 1
      %s182 = scalar_select %p179, %s180, %s181
      %p185 = pneg %p179
      %p186 = scmp.eq.s32.totalorder %s18, 2
      %p187 = por %p185, %p186
      %p188 = scmp.ne.s32.totalorder %s180, %s183
      %p189 = scmp.eq.s32.totalorder %s18, 0
      %p190 = por %p188, %p189
      %p191 = scmp.ne.s32.totalorder %s180, %s183
      %p192 = scmp.eq.s32.totalorder %s23, 2
      %p193 = por %p191, %p192
      %p194 = scmp.ne.s32.totalorder %s183, %s184
      %p195 = scmp.eq.s32.totalorder %s23, 0
      %p196 = por %p194, %p195
      %p197 = scmp.ne.s32.totalorder %s183, %s184
      %p198 = scmp.eq.s32.totalorder %s24, 2
      %p199 = por %p197, %p198
      %p201 = scmp.ne.s32.totalorder %s184, %s200
      %p202 = scmp.eq.s32.totalorder %s24, 0
      %p203 = por %p201, %p202
      %p204 = scmp.le.s32.totalorder 1, %s18
      %p205 = scmp.lt.s32.totalorder %s18, 4
      %p206 = pnand %p204, %p205
      %p207 = pneg %p206
      // Predicated region
      $region9: #{tpu_custom_call.1} parent=5 // pred_check
        _
      $region10: #{tpu_custom_call.1} parent=5 // pred_check_branch
        %209 = sbr.rel (%p206) target = $region12
      $region11: #{tpu_custom_call.1} parent=5 // pred_region
        %s210 = ssub.s32 %s18, 1
        // Predicated region
        $region13: #{tpu_custom_call.1} parent=11 // pred_check
          %p211 = pneg %p65
        $region14: #{tpu_custom_call.1} parent=11 // pred_check_branch
          %213 = sbr.rel (%p211) target = $region16
        $region15: #{tpu_custom_call.1} parent=11 // pred_region
          _
        $region16: #{tpu_custom_call.1} parent=11 // pred_fallthru
          _
        // Predicated region
        $region17: #{tpu_custom_call.1} parent=11 // pred_check
          %p214 = pneg %p86
        $region18: #{tpu_custom_call.1} parent=11 // pred_check_branch
          %216 = sbr.rel (%p214) target = $region20
        $region19: #{tpu_custom_call.1} parent=11 // pred_region
          _
        $region20: #{tpu_custom_call.1} parent=11 // pred_fallthru
          _
        // Predicated region
        $region21: #{tpu_custom_call.1} parent=11 // pred_check
          %p217 = pneg %p107
        $region22: #{tpu_custom_call.1} parent=11 // pred_check_branch
          %219 = sbr.rel (%p217) target = $region24
        $region23: #{tpu_custom_call.1} parent=11 // pred_region
          _
        $region24: #{tpu_custom_call.1} parent=11 // pred_fallthru
          _
        // Predicated region
        $region25: #{tpu_custom_call.1} parent=11 // pred_check
          %p220 = pneg %p128
        $region26: #{tpu_custom_call.1} parent=11 // pred_check_branch
          %222 = sbr.rel (%p220) target = $region28
        $region27: #{tpu_custom_call.1} parent=11 // pred_region
          _
        $region28: #{tpu_custom_call.1} parent=11 // pred_fallthru
          _
        // Predicated region
        $region29: #{tpu_custom_call.1} parent=11 // pred_check
          %p223 = pneg %p149
        $region30: #{tpu_custom_call.1} parent=11 // pred_check_branch
          %225 = sbr.rel (%p223) target = $region32
        $region31: #{tpu_custom_call.1} parent=11 // pred_region
          _
        $region32: #{tpu_custom_call.1} parent=11 // pred_fallthru
          _
        // Predicated region
        $region33: #{tpu_custom_call.1} parent=11 // pred_check
          %p226 = pneg %p170
        $region34: #{tpu_custom_call.1} parent=11 // pred_check_branch
          %228 = sbr.rel (%p226) target = $region36
        $region35: #{tpu_custom_call.1} parent=11 // pred_region
          _
        $region36: #{tpu_custom_call.1} parent=11 // pred_fallthru
          _
      $region12: #{tpu_custom_call.1} parent=5 // pred_fallthru
        _
      %p229 = scmp.lt.s32.totalorder %s18, 3
      // Predicated region
      $region37: #{tpu_custom_call.1} parent=5 // pred_check
        %p230 = pneg %p229
      $region38: #{tpu_custom_call.1} parent=5 // pred_check_branch
        %232 = sbr.rel (%p230) target = $region40
      $region39: #{tpu_custom_call.1} parent=5 // pred_region
        // Predicated region
        $region41: #{tpu_custom_call.1} parent=39 // pred_check
          %p233 = pneg %p38
        $region42: #{tpu_custom_call.1} parent=39 // pred_check_branch
          %235 = sbr.rel (%p233) target = $region44
        $region43: #{tpu_custom_call.1} parent=39 // pred_region
          %s236 = smul.u32 48, %s18
          %s237 = ssub.s32 125, %s236
          %p238 = scmp.lt.s32.totalorder %s237, 48
          %s239 = scalar_select %p238, %s237, 48
          %s240 = smul.u32 128, %s239
          %p241 = scmp.lt.s32.totalorder %s236, 124
          %s242 = scalar_select %p241, %s236, 124
          %s243 = smul.addr %s242, 8
          %s244 = scalar_lea.vmem %s0, %s243
          %s245 = smul.u32 48, %s18
          %s246 = ssub.s32 125, %s245
          %p247 = scmp.lt.s32.totalorder %s246, 48
          %s248 = scalar_select %p247, %s246, 48
          %s249 = smul.u32 128, %s248
        $region44: #{tpu_custom_call.1} parent=39 // pred_fallthru
          _
      $region40: #{tpu_custom_call.1} parent=5 // pred_fallthru
        _
      %p250 = scmp.le.s32.totalorder 1, %s18
      %p251 = scmp.lt.s32.totalorder %s18, 4
      %p252 = pnand %p250, %p251
      %p253 = pneg %p252
      // Predicated region
      $region45: #{tpu_custom_call.1} parent=5 // pred_check
        _
      $region46: #{tpu_custom_call.1} parent=5 // pred_check_branch
        %255 = sbr.rel (%p252) target = $region48
      $region47: #{tpu_custom_call.1} parent=5 // pred_region
        %s256 = ssub.s32 %s18, 1
        %s257 = smul.u32 48, %s23
        %s258 = ssub.s32 125, %s257
        %p259 = scmp.lt.s32.totalorder %s258, 48
        %s260 = scalar_select %p259, %s258, 48
        %s261 = smul.u32 128, %s260
        %p262 = scmp.lt.s32.totalorder %s257, 124
        %s263 = scalar_select %p262, %s257, 124
        %s264 = smul.addr %s263, 8
        %s265 = scalar_lea.vmem %s0, %s264
        %p266 = pneg %p44
        %p267 = pneg %p41
        %p268 = pneg %p65
        %p269 = pneg %p62
        %p270 = pneg %p86
        %p271 = pneg %p83
        %p272 = pneg %p107
        %p273 = pneg %p104
        %p274 = pneg %p128
        %p275 = pneg %p125
        %p276 = pneg %p149
        %p277 = pneg %p146
        %p278 = pneg %p170
        %p279 = pneg %p167
        %p280 = pneg %p196
        %p281 = pneg %p193
        %s282 = sand.u32 %s183, 1
        %s283 = scalar_lea.sflag [#allocation4], %s282
        %s284 = sand.u32 %s183, 1
        %s285 = smul.addr %s284, 3
        %s286 = scalar_lea.vmem [#allocation3], %s285
        %s287 = smul.u32 48, %s23
        %s288 = ssub.s32 125, %s287
        %p289 = scmp.lt.s32.totalorder %s288, 48
        %s290 = scalar_select %p289, %s288, 48
        %s291 = smul.u32 128, %s290
        %p292 = scmp.lt.s32.totalorder %s287, 124
        %s293 = scalar_select %p292, %s287, 124
        %s294 = smul.addr %s293, 8
        %s295 = scalar_lea.vmem %s0, %s294
        %s296 = smul.u32 48, %s23
        %s297 = ssub.s32 125, %s296
        %p298 = scmp.lt.s32.totalorder %s297, 48
        %s299 = scalar_select %p298, %s297, 48
        %s300 = smul.u32 128, %s299
        %s301 = smul.u32 3, %s23
        %s302 = ssub.s32 8, %s301
        %p303 = scmp.lt.s32.totalorder %s302, 3
        %s304 = scalar_select %p303, %s302, 3
        %s305 = smul.u32 16, %s304
        %v306 = vld [vmem:[%s1] sm:$0xff]
        %v307 = vld [vmem:[%s1 + $0x8] sm:$0xff]
        %v308 = vld [vmem:[%s295] sm:$0xff]
        %v309 = vld [vmem:[%s295 + $0x8] sm:$0xff]
        %v310 = vld [vmem:[%s295 + $0x10] sm:$0xff]
        %v311 = vld [vmem:[%s295 + $0x18] sm:$0xff]
        %v312 = vld [vmem:[%s295 + $0x20] sm:$0xff]
        %v313 = vld [vmem:[%s295 + $0x28] sm:$0xff]
        %v314 = vld [vmem:[%s295 + $0x30] sm:$0xff]
        %v315 = vld [vmem:[%s295 + $0x38] sm:$0xff]
        %v316 = vld [vmem:[%s295 + $0x40] sm:$0xff]
        %v317 = vld [vmem:[%s295 + $0x48] sm:$0xff]
        %v318 = vld [vmem:[%s295 + $0x50] sm:$0xff]
        %v319 = vld [vmem:[%s295 + $0x58] sm:$0xff]
        %v320 = vld [vmem:[%s295 + $0x60] sm:$0xff]
        %v321 = vld [vmem:[%s295 + $0x68] sm:$0xff]
        %v322 = vld [vmem:[%s295 + $0x70] sm:$0xff]
        %v323 = vld [vmem:[%s295 + $0x78] sm:$0xff]
        %v324 = vld [vmem:[%s295 + $0x80] sm:$0xff]
        %v325 = vld [vmem:[%s295 + $0x88] sm:$0xff]
        %v326 = vld [vmem:[%s295 + $0x90] sm:$0xff]
        %v327 = vld [vmem:[%s295 + $0x98] sm:$0xff]
        %v328 = vld [vmem:[%s295 + $0xa0] sm:$0xff]
        %v329 = vld [vmem:[%s295 + $0xa8] sm:$0xff]
        %v330 = vld [vmem:[%s295 + $0xb0] sm:$0xff]
        %v331 = vld [vmem:[%s295 + $0xb8] sm:$0xff]
        %v332 = vld [vmem:[%s295 + $0xc0] sm:$0xff]
        %v333 = vld [vmem:[%s295 + $0xc8] sm:$0xff]
        %v334 = vld [vmem:[%s295 + $0xd0] sm:$0xff]
        %v335 = vld [vmem:[%s295 + $0xd8] sm:$0xff]
        %v336 = vld [vmem:[%s295 + $0xe0] sm:$0xff]
        %v337 = vld [vmem:[%s295 + $0xe8] sm:$0xff]
        %v338 = vld [vmem:[%s295 + $0xf0] sm:$0xff]
        %v339 = vld [vmem:[%s295 + $0xf8] sm:$0xff]
        %v340 = vld [vmem:[%s295 + $0x100] sm:$0xff]
        %v341 = vld [vmem:[%s295 + $0x108] sm:$0xff]
        %v342 = vld [vmem:[%s295 + $0x110] sm:$0xff]
        %v343 = vld [vmem:[%s295 + $0x118] sm:$0xff]
        %v344 = vld [vmem:[%s295 + $0x120] sm:$0xff]
        %v345 = vld [vmem:[%s295 + $0x128] sm:$0xff]
        %v346 = vld [vmem:[%s295 + $0x130] sm:$0xff]
        %v347 = vld [vmem:[%s295 + $0x138] sm:$0xff]
        %v348 = vld [vmem:[%s295 + $0x140] sm:$0xff]
        %v349 = vld [vmem:[%s295 + $0x148] sm:$0xff]
        %v350 = vld [vmem:[%s295 + $0x150] sm:$0xff]
        %v351 = vld [vmem:[%s295 + $0x158] sm:$0xff]
        %v352 = vld [vmem:[%s295 + $0x160] sm:$0xff]
        %v353 = vld [vmem:[%s295 + $0x168] sm:$0xff]
        %v354 = vld [vmem:[%s295 + $0x170] sm:$0xff]
        %v355 = vld [vmem:[%s295 + $0x178] sm:$0xff]
        %v356 = vld [vmem:[%s2] sm:$0xff]
        %v357 = vld [vmem:[%s2 + $0x8] sm:$0xff]
        %359 = vset.pattern.permute.xlu0 0
        %360 = vperm.xlu0 %359, %v356
        %v361 = vpop.permute.xlu0 %360
        %364 = vset.pattern.permute.xlu0 0
        %365 = vperm.xlu0 %364, %v357
        %v366 = vpop.permute.xlu0 %365
        %vm368 = vcmask 72704
        %v370 = vsel %vm368, %v306, 0
        %v373 = vsel %vm368, %v307, 0
        %v376 = vsel %vm368, %v308, 0
        %v379 = vsel %vm368, %v309, 0
        %v382 = vsel %vm368, %v310, 0
        %v385 = vsel %vm368, %v311, 0
        %v388 = vsel %vm368, %v312, 0
        %v391 = vsel %vm368, %v313, 0
        %v394 = vsel %vm368, %v314, 0
        %v397 = vsel %vm368, %v315, 0
        %v400 = vsel %vm368, %v316, 0
        %v403 = vsel %vm368, %v317, 0
        %v406 = vsel %vm368, %v318, 0
        %v409 = vsel %vm368, %v319, 0
        %v412 = vsel %vm368, %v320, 0
        %v415 = vsel %vm368, %v321, 0
        %v418 = vsel %vm368, %v322, 0
        %v421 = vsel %vm368, %v323, 0
        %v424 = vsel %vm368, %v324, 0
        %v427 = vsel %vm368, %v325, 0
        %v430 = vsel %vm368, %v326, 0
        %v433 = vsel %vm368, %v327, 0
        %v436 = vsel %vm368, %v328, 0
        %v439 = vsel %vm368, %v329, 0
        %v442 = vsel %vm368, %v330, 0
        %v445 = vsel %vm368, %v331, 0
        %v448 = vsel %vm368, %v332, 0
        %v451 = vsel %vm368, %v333, 0
        %v454 = vsel %vm368, %v334, 0
        %v457 = vsel %vm368, %v335, 0
        %v460 = vsel %vm368, %v336, 0
        %v463 = vsel %vm368, %v337, 0
        %v466 = vsel %vm368, %v338, 0
        %v469 = vsel %vm368, %v339, 0
        %v472 = vsel %vm368, %v340, 0
        %v475 = vsel %vm368, %v341, 0
        %v478 = vsel %vm368, %v342, 0
        %v481 = vsel %vm368, %v343, 0
        %v484 = vsel %vm368, %v344, 0
        %v487 = vsel %vm368, %v345, 0
        %v490 = vsel %vm368, %v346, 0
        %v493 = vsel %vm368, %v347, 0
        %v496 = vsel %vm368, %v348, 0
        %v499 = vsel %vm368, %v349, 0
        %v502 = vsel %vm368, %v350, 0
        %v505 = vsel %vm368, %v351, 0
        %v508 = vsel %vm368, %v352, 0
        %v511 = vsel %vm368, %v353, 0
        %v514 = vsel %vm368, %v354, 0
        %v517 = vsel %vm368, %v355, 0
        %519 = vmatprep.subr.mxu0 0.0
        %520 = vmatpush1.xpose.msra.mxu0 %v376
        %521 = vmatprep.subr.mxu0 0.0
        %522 = vmatpush1.xpose.msra.mxu0 %v379
        %523 = vmatprep.subr.mxu0 0.0
        %524 = vmatpush1.xpose.msra.mxu0 %v382
        %525 = vmatprep.subr.mxu0 0.0
        %526 = vmatpush1.xpose.msra.mxu0 %v385
        %527 = vmatprep.subr.mxu0 0.0
        %528 = vmatpush1.xpose.msra.mxu0 %v388
        %529 = vmatprep.subr.mxu0 0.0
        %530 = vmatpush1.xpose.msra.mxu0 %v391
        %531 = vmatprep.subr.mxu0 0.0
        %532 = vmatpush1.xpose.msra.mxu0 %v394
        %533 = vmatprep.subr.mxu0 0.0
        %534 = vmatpush1.xpose.msra.mxu0 %v397
        %535 = vmatprep.subr.mxu0 0.0
        %536 = vmatpush1.xpose.msra.mxu0 %v400
        %537 = vmatprep.subr.mxu0 0.0
        %538 = vmatpush1.xpose.msra.mxu0 %v403
        %539 = vmatprep.subr.mxu0 0.0
        %540 = vmatpush1.xpose.msra.mxu0 %v406
        %541 = vmatprep.subr.mxu0 0.0
        %542 = vmatpush1.xpose.msra.mxu0 %v409
        %543 = vmatprep.subr.mxu0 0.0
        %544 = vmatpush1.xpose.msra.mxu0 %v412
        %545 = vmatprep.subr.mxu0 0.0
        %546 = vmatpush1.xpose.msra.mxu0 %v415
        %547 = vmatprep.subr.mxu0 0.0
        %548 = vmatpush1.xpose.msra.mxu0 %v418
        %549 = vmatprep.subr.mxu0 0.0
        %550 = vmatpush1.xpose.msra.mxu0 %v421
        %551 = vmatprep.subr.mxu0 0.0
        %552 = vmatpush1.xpose.msra.mxu0 %v424
        %553 = vmatprep.subr.mxu0 0.0
        %554 = vmatpush1.xpose.msra.mxu0 %v427
        %555 = vmatprep.subr.mxu0 0.0
        %556 = vmatpush1.xpose.msra.mxu0 %v430
        %557 = vmatprep.subr.mxu0 0.0
        %558 = vmatpush1.xpose.msra.mxu0 %v433
        %559 = vmatprep.subr.mxu0 0.0
        %560 = vmatpush1.xpose.msra.mxu0 %v436
        %561 = vmatprep.subr.mxu0 0.0
        %562 = vmatpush1.xpose.msra.mxu0 %v439
        %563 = vmatprep.subr.mxu0 0.0
        %564 = vmatpush1.xpose.msra.mxu0 %v442
        %565 = vmatprep.subr.mxu0 0.0
        %566 = vmatpush1.xpose.msra.mxu0 %v445
        %567 = vmatprep.subr.mxu0 0.0
        %568 = vmatpush1.xpose.msra.mxu0 %v448
        %569 = vmatprep.subr.mxu0 0.0
        %570 = vmatpush1.xpose.msra.mxu0 %v451
        %571 = vmatprep.subr.mxu0 0.0
        %572 = vmatpush1.xpose.msra.mxu0 %v454
        %573 = vmatprep.subr.mxu0 0.0
        %574 = vmatpush1.xpose.msra.mxu0 %v457
        %575 = vmatprep.subr.mxu0 0.0
        %576 = vmatpush1.xpose.msra.mxu0 %v460
        %577 = vmatprep.subr.mxu0 0.0
        %578 = vmatpush1.xpose.msra.mxu0 %v463
        %579 = vmatprep.subr.mxu0 0.0
        %580 = vmatpush1.xpose.msra.mxu0 %v466
        %581 = vmatprep.subr.mxu0 0.0
        %582 = vmatpush1.xpose.msra.mxu0 %v469
        %583 = vmatprep.mubr.f32.mxu0 0.0
        %584 = vmatmul.mubr.f32.gmra.mrb[0].mxu0 %v370
        %v585 = vpop.f32.mrb[0].mxu0
        %v586 = vadd.f32 %v361, %v585
        %v587 = vpop.f32.mrb[0].mxu0
        %v588 = vadd.f32 %v361, %v587
        %589 = vmatprep.mubr.f32.mxu0 0.0
        %590 = vmatmul.mubr.f32.gmra.mrb[0].mxu0 %v373
        %v591 = vpop.f32.mrb[0].mxu0
        %v592 = vadd.f32 %v366, %v591
        %v593 = vpop.f32.mrb[0].mxu0
        %v594 = vadd.f32 %v366, %v593
        %595 = vdwg.mxu0
        %596 = vmatprep.subr.mxu0 0.0
        %597 = vmatpush1.xpose.msra.mxu0 %v472
        %598 = vmatprep.subr.mxu0 0.0
        %599 = vmatpush1.xpose.msra.mxu0 %v475
        %600 = vmatprep.subr.mxu0 0.0
        %601 = vmatpush1.xpose.msra.mxu0 %v478
        %602 = vmatprep.subr.mxu0 0.0
        %603 = vmatpush1.xpose.msra.mxu0 %v481
        %604 = vmatprep.subr.mxu0 0.0
        %605 = vmatpush1.xpose.msra.mxu0 %v484
        %606 = vmatprep.subr.mxu0 0.0
        %607 = vmatpush1.xpose.msra.mxu0 %v487
        %608 = vmatprep.subr.mxu0 0.0
        %609 = vmatpush1.xpose.msra.mxu0 %v490
        %610 = vmatprep.subr.mxu0 0.0
        %611 = vmatpush1.xpose.msra.mxu0 %v493
        %612 = vmatprep.subr.mxu0 0.0
        %613 = vmatpush1.xpose.msra.mxu0 %v496
        %614 = vmatprep.subr.mxu0 0.0
        %615 = vmatpush1.xpose.msra.mxu0 %v499
        %616 = vmatprep.subr.mxu0 0.0
        %617 = vmatpush1.xpose.msra.mxu0 %v502
        %618 = vmatprep.subr.mxu0 0.0
        %619 = vmatpush1.xpose.msra.mxu0 %v505
        %620 = vmatprep.subr.mxu0 0.0
        %621 = vmatpush1.xpose.msra.mxu0 %v508
        %622 = vmatprep.subr.mxu0 0.0
        %623 = vmatpush1.xpose.msra.mxu0 %v511
        %624 = vmatprep.subr.mxu0 0.0
        %625 = vmatpush1.xpose.msra.mxu0 %v514
        %626 = vmatprep.subr.mxu0 0.0
        %627 = vmatpush1.xpose.msra.mxu0 %v517
        %628 = vmatprep.subr.mxu0 0.0
        %629 = vmatpush1.xpose.msra.mxu0 0.0
        %630 = vmatprep.subr.mxu0 0.0
        %631 = vmatpush1.xpose.msra.mxu0 0.0
        %632 = vmatprep.subr.mxu0 0.0
        %633 = vmatpush1.xpose.msra.mxu0 0.0
        %634 = vmatprep.subr.mxu0 0.0
        %635 = vmatpush1.xpose.msra.mxu0 0.0
        %636 = vmatprep.subr.mxu0 0.0
        %637 = vmatpush1.xpose.msra.mxu0 0.0
        %638 = vmatprep.subr.mxu0 0.0
        %639 = vmatpush1.xpose.msra.mxu0 0.0
        %640 = vmatprep.subr.mxu0 0.0
        %641 = vmatpush1.xpose.msra.mxu0 0.0
        %642 = vmatprep.subr.mxu0 0.0
        %643 = vmatpush1.xpose.msra.mxu0 0.0
        %644 = vmatprep.subr.mxu0 0.0
        %645 = vmatpush1.xpose.msra.mxu0 0.0
        %646 = vmatprep.subr.mxu0 0.0
        %647 = vmatpush1.xpose.msra.mxu0 0.0
        %648 = vmatprep.subr.mxu0 0.0
        %649 = vmatpush1.xpose.msra.mxu0 0.0
        %650 = vmatprep.subr.mxu0 0.0
        %651 = vmatpush1.xpose.msra.mxu0 0.0
        %652 = vmatprep.subr.mxu0 0.0
        %653 = vmatpush1.xpose.msra.mxu0 0.0
        %654 = vmatprep.subr.mxu0 0.0
        %655 = vmatpush1.xpose.msra.mxu0 0.0
        %656 = vmatprep.subr.mxu0 0.0
        %657 = vmatpush1.xpose.msra.mxu0 0.0
        %658 = vmatprep.subr.mxu0 0.0
        %659 = vmatpush1.xpose.msra.mxu0 0.0
        %660 = vmatprep.mubr.f32.mxu0 0.0
        %661 = vmatmul.mubr.f32.gmra.mrb[0].mxu0 %v370
        %v662 = vpop.f32.mrb[0].mxu0
        %v663 = vadd.f32 %v361, %v662
        %v664 = vpop.f32.mrb[0].mxu0
        %665 = vmatprep.mubr.f32.mxu0 0.0
        %666 = vmatmul.mubr.f32.gmra.mrb[0].mxu0 %v373
        %v667 = vpop.f32.mrb[0].mxu0
        %v668 = vadd.f32 %v366, %v667
        %v669 = vpop.f32.mrb[0].mxu0
        %670 = vdwg.mxu0
        %vm671 = vcmp.gt.f32.partialorder %v586, 0.0
        %vm672 = vcmp.gt.f32.partialorder %v588, 0.0
        %vm673 = vcmp.gt.f32.partialorder %v663, 0.0
        %vm674 = vcmp.gt.f32.partialorder %v592, 0.0
        %vm675 = vcmp.gt.f32.partialorder %v594, 0.0
        %vm676 = vcmp.gt.f32.partialorder %v668, 0.0
        %v677 = vmul.f32 %v586, 1.442695
        %v678 = vpow.pop %v677
        %v679 = vmul.f32 %v588, 1.442695
        %v680 = vpow.pop %v679
        %v681 = vmul.f32 %v663, 1.442695
        %v682 = vpow.pop %v681
        %v683 = vmul.f32 %v592, 1.442695
        %v684 = vpow.pop %v683
        %v685 = vmul.f32 %v594, 1.442695
        %v686 = vpow.pop %v685
        %v687 = vmul.f32 %v668, 1.442695
        %v688 = vpow.pop %v687
        %v689 = vsub.f32 %v678, 1.0
        %v690 = vsub.f32 %v680, 1.0
        %v691 = vsub.f32 %v682, 1.0
        %v692 = vsub.f32 %v684, 1.0
        %v693 = vsub.f32 %v686, 1.0
        %v694 = vsub.f32 %v688, 1.0
        %v695 = vsel %vm671, %v586, %v689
        %v696 = vsel %vm672, %v588, %v690
        %v697 = vsel %vm673, %v663, %v691
        %v698 = vsel %vm674, %v592, %v692
        %v699 = vsel %vm675, %v594, %v693
        %v700 = vsel %vm676, %v668, %v694
        %v701 = vld [vmem:[%s3] sm:$0xff]
        %v702 = vld [vmem:[%s4] sm:$0xff]
        %704 = vset.pattern.permute.xlu0 0
        %705 = vperm.xlu0 %704, %v702
        %v706 = vpop.permute.xlu0 %705
        %vm708 = vcmask 130048
        %v710 = vsel %vm708, %v701, 0
        %712 = vmatprep.subr.mxu0 %v696
        %713 = vmatpush1.msra.mxu0 %v695
        %714 = vmatprep.subr.mxu0 %v699
        %715 = vmatpush1.msra.mxu0 %v698
        %716 = vmatprep.subr.mxu0 0.0
        %717 = vmatpush1.msra.mxu0 0.0
        %718 = vmatprep.subr.mxu0 0.0
        %719 = vmatpush1.msra.mxu0 0.0
        %720 = vmatprep.subr.mxu0 0.0
        %721 = vmatpush1.msra.mxu0 0.0
        %722 = vmatprep.subr.mxu0 0.0
        %723 = vmatpush1.msra.mxu0 0.0
        %724 = vmatprep.subr.mxu0 0.0
        %725 = vmatpush1.msra.mxu0 0.0
        %726 = vmatprep.subr.mxu0 0.0
        %727 = vmatpush1.msra.mxu0 0.0
        %728 = vmatprep.subr.mxu0 0.0
        %729 = vmatpush1.msra.mxu0 0.0
        %730 = vmatprep.subr.mxu0 0.0
        %731 = vmatpush1.msra.mxu0 0.0
        %732 = vmatprep.subr.mxu0 0.0
        %733 = vmatpush1.msra.mxu0 0.0
        %734 = vmatprep.subr.mxu0 0.0
        %735 = vmatpush1.msra.mxu0 0.0
        %736 = vmatprep.subr.mxu0 0.0
        %737 = vmatpush1.msra.mxu0 0.0
        %738 = vmatprep.subr.mxu0 0.0
        %739 = vmatpush1.msra.mxu0 0.0
        %740 = vmatprep.subr.mxu0 0.0
        %741 = vmatpush1.msra.mxu0 0.0
        %742 = vmatprep.subr.mxu0 0.0
        %743 = vmatpush1.msra.mxu0 0.0
        %744 = vmatprep.subr.mxu0 0.0
        %745 = vmatpush1.msra.mxu0 0.0
        %746 = vmatprep.subr.mxu0 0.0
        %747 = vmatpush1.msra.mxu0 0.0
        %748 = vmatprep.subr.mxu0 0.0
        %749 = vmatpush1.msra.mxu0 0.0
        %750 = vmatprep.subr.mxu0 0.0
        %751 = vmatpush1.msra.mxu0 0.0
        %752 = vmatprep.subr.mxu0 0.0
        %753 = vmatpush1.msra.mxu0 0.0
        %754 = vmatprep.subr.mxu0 0.0
        %755 = vmatpush1.msra.mxu0 0.0
        %756 = vmatprep.subr.mxu0 0.0
        %757 = vmatpush1.msra.mxu0 0.0
        %758 = vmatprep.subr.mxu0 0.0
        %759 = vmatpush1.msra.mxu0 0.0
        %760 = vmatprep.subr.mxu0 0.0
        %761 = vmatpush1.msra.mxu0 0.0
        %762 = vmatprep.subr.mxu0 0.0
        %763 = vmatpush1.msra.mxu0 0.0
        %764 = vmatprep.subr.mxu0 0.0
        %765 = vmatpush1.msra.mxu0 0.0
        %766 = vmatprep.subr.mxu0 0.0
        %767 = vmatpush1.msra.mxu0 0.0
        %768 = vmatprep.subr.mxu0 0.0
        %769 = vmatpush1.msra.mxu0 0.0
        %770 = vmatprep.subr.mxu0 0.0
        %771 = vmatpush1.msra.mxu0 0.0
        %772 = vmatprep.subr.mxu0 0.0
        %773 = vmatpush1.msra.mxu0 0.0
        %774 = vmatprep.subr.mxu0 0.0
        %775 = vmatpush1.msra.mxu0 0.0
        %776 = vmatprep.mubr.f32.mxu0 0.0
        %777 = vmatmul.mubr.f32.gmra.mrb[0].mxu0 %v710
        %v778 = vpop.f32.mrb[0].mxu0
        %v779 = vadd.f32 %v706, %v778
        %v780 = vpop.f32.mrb[0].mxu0
        %v781 = vadd.f32 %v706, %v780
        %782 = vdwg.mxu0
        %783 = vmatprep.subr.mxu0 0.0
        %784 = vmatpush1.msra.mxu0 %v697
        %785 = vmatprep.subr.mxu0 0.0
        %786 = vmatpush1.msra.mxu0 %v700
        %787 = vmatprep.subr.mxu0 0.0
        %788 = vmatpush1.msra.mxu0 0.0
        %789 = vmatprep.subr.mxu0 0.0
        %790 = vmatpush1.msra.mxu0 0.0
        %791 = vmatprep.subr.mxu0 0.0
        %792 = vmatpush1.msra.mxu0 0.0
        %793 = vmatprep.subr.mxu0 0.0
        %794 = vmatpush1.msra.mxu0 0.0
        %795 = vmatprep.subr.mxu0 0.0
        %796 = vmatpush1.msra.mxu0 0.0
        %797 = vmatprep.subr.mxu0 0.0
        %798 = vmatpush1.msra.mxu0 0.0
        %799 = vmatprep.subr.mxu0 0.0
        %800 = vmatpush1.msra.mxu0 0.0
        %801 = vmatprep.subr.mxu0 0.0
        %802 = vmatpush1.msra.mxu0 0.0
        %803 = vmatprep.subr.mxu0 0.0
        %804 = vmatpush1.msra.mxu0 0.0
        %805 = vmatprep.subr.mxu0 0.0
        %806 = vmatpush1.msra.mxu0 0.0
        %807 = vmatprep.subr.mxu0 0.0
        %808 = vmatpush1.msra.mxu0 0.0
        %809 = vmatprep.subr.mxu0 0.0
        %810 = vmatpush1.msra.mxu0 0.0
        %811 = vmatprep.subr.mxu0 0.0
        %812 = vmatpush1.msra.mxu0 0.0
        %813 = vmatprep.subr.mxu0 0.0
        %814 = vmatpush1.msra.mxu0 0.0
        %815 = vmatprep.subr.mxu0 0.0
        %816 = vmatpush1.msra.mxu0 0.0
        %817 = vmatprep.subr.mxu0 0.0
        %818 = vmatpush1.msra.mxu0 0.0
        %819 = vmatprep.subr.mxu0 0.0
        %820 = vmatpush1.msra.mxu0 0.0
        %821 = vmatprep.subr.mxu0 0.0
        %822 = vmatpush1.msra.mxu0 0.0
        %823 = vmatprep.subr.mxu0 0.0
        %824 = vmatpush1.msra.mxu0 0.0
        %825 = vmatprep.subr.mxu0 0.0
        %826 = vmatpush1.msra.mxu0 0.0
        %827 = vmatprep.subr.mxu0 0.0
        %828 = vmatpush1.msra.mxu0 0.0
        %829 = vmatprep.subr.mxu0 0.0
        %830 = vmatpush1.msra.mxu0 0.0
        %831 = vmatprep.subr.mxu0 0.0
        %832 = vmatpush1.msra.mxu0 0.0
        %833 = vmatprep.subr.mxu0 0.0
        %834 = vmatpush1.msra.mxu0 0.0
        %835 = vmatprep.subr.mxu0 0.0
        %836 = vmatpush1.msra.mxu0 0.0
        %837 = vmatprep.subr.mxu0 0.0
        %838 = vmatpush1.msra.mxu0 0.0
        %839 = vmatprep.subr.mxu0 0.0
        %840 = vmatpush1.msra.mxu0 0.0
        %841 = vmatprep.subr.mxu0 0.0
        %842 = vmatpush1.msra.mxu0 0.0
        %843 = vmatprep.subr.mxu0 0.0
        %844 = vmatpush1.msra.mxu0 0.0
        %845 = vmatprep.subr.mxu0 0.0
        %846 = vmatpush1.msra.mxu0 0.0
        %847 = vmatprep.mubr.f32.mxu0 0.0
        %848 = vmatmul.mubr.f32.gmra.mrb[0].mxu0 %v710
        %v849 = vpop.f32.mrb[0].mxu0
        %v850 = vadd.f32 %v706, %v849
        %v851 = vpop.f32.mrb[0].mxu0
        %852 = vdwg.mxu0
        %vm853 = vcmp.gt.f32.partialorder %v779, 0.0
        %vm854 = vcmp.gt.f32.partialorder %v781, 0.0
        %vm855 = vcmp.gt.f32.partialorder %v850, 0.0
        %v856 = vmul.f32 %v779, 1.442695
        %v857 = vpow.pop %v856
        %v858 = vmul.f32 %v781, 1.442695
        %v859 = vpow.pop %v858
        %v860 = vmul.f32 %v850, 1.442695
        %v861 = vpow.pop %v860
        %v862 = vsub.f32 %v857, 1.0
        %v863 = vsub.f32 %v859, 1.0
        %v864 = vsub.f32 %v861, 1.0
        %v865 = vsel %vm853, %v779, %v862
        %v866 = vsel %vm854, %v781, %v863
        %v867 = vsel %vm855, %v850, %v864
        %v868 = vld [vmem:[%s5] sm:$0x1]
        %v869 = vld [vmem:[#allocation2] sm:$0x1]
        %871 = vset.pattern.permute.xlu0 0
        %872 = vperm.xlu0 %871, %v869
        %v873 = vpop.permute.xlu0 %872
        %v875 = vlaneseq
        %v876 = vshrl.u32 %v875, 7
        %v877 = vsub.s32 0, %v876
        %v878 = vrot.slane %v873, %v877
        %vm879 = vcmask 64512
        %v881 = vsel %vm879, %v868, 0
        %883 = vmatprep.subr.mxu0 %v866
        %884 = vmatpush1.msra.mxu0 %v865
        %885 = vmatprep.subr.mxu0 0.0
        %886 = vmatpush1.msra.mxu0 0.0
        %887 = vmatprep.subr.mxu0 0.0
        %888 = vmatpush1.msra.mxu0 0.0
        %889 = vmatprep.subr.mxu0 0.0
        %890 = vmatpush1.msra.mxu0 0.0
        %891 = vmatprep.subr.mxu0 0.0
        %892 = vmatpush1.msra.mxu0 0.0
        %893 = vmatprep.subr.mxu0 0.0
        %894 = vmatpush1.msra.mxu0 0.0
        %895 = vmatprep.subr.mxu0 0.0
        %896 = vmatpush1.msra.mxu0 0.0
        %897 = vmatprep.subr.mxu0 0.0
        %898 = vmatpush1.msra.mxu0 0.0
        %899 = vmatprep.subr.mxu0 0.0
        %900 = vmatpush1.msra.mxu0 0.0
        %901 = vmatprep.subr.mxu0 0.0
        %902 = vmatpush1.msra.mxu0 0.0
        %903 = vmatprep.subr.mxu0 0.0
        %904 = vmatpush1.msra.mxu0 0.0
        %905 = vmatprep.subr.mxu0 0.0
        %906 = vmatpush1.msra.mxu0 0.0
        %907 = vmatprep.subr.mxu0 0.0
        %908 = vmatpush1.msra.mxu0 0.0
        %909 = vmatprep.subr.mxu0 0.0
        %910 = vmatpush1.msra.mxu0 0.0
        %911 = vmatprep.subr.mxu0 0.0
        %912 = vmatpush1.msra.mxu0 0.0
        %913 = vmatprep.subr.mxu0 0.0
        %914 = vmatpush1.msra.mxu0 0.0
        %915 = vmatprep.subr.mxu0 0.0
        %916 = vmatpush1.msra.mxu0 0.0
        %917 = vmatprep.subr.mxu0 0.0
        %918 = vmatpush1.msra.mxu0 0.0
        %919 = vmatprep.subr.mxu0 0.0
        %920 = vmatpush1.msra.mxu0 0.0
        %921 = vmatprep.subr.mxu0 0.0
        %922 = vmatpush1.msra.mxu0 0.0
        %923 = vmatprep.subr.mxu0 0.0
        %924 = vmatpush1.msra.mxu0 0.0
        %925 = vmatprep.subr.mxu0 0.0
        %926 = vmatpush1.msra.mxu0 0.0
        %927 = vmatprep.subr.mxu0 0.0
        %928 = vmatpush1.msra.mxu0 0.0
        %929 = vmatprep.subr.mxu0 0.0
        %930 = vmatpush1.msra.mxu0 0.0
        %931 = vmatprep.subr.mxu0 0.0
        %932 = vmatpush1.msra.mxu0 0.0
        %933 = vmatprep.subr.mxu0 0.0
        %934 = vmatpush1.msra.mxu0 0.0
        %935 = vmatprep.subr.mxu0 0.0
        %936 = vmatpush1.msra.mxu0 0.0
        %937 = vmatprep.subr.mxu0 0.0
        %938 = vmatpush1.msra.mxu0 0.0
        %939 = vmatprep.subr.mxu0 0.0
        %940 = vmatpush1.msra.mxu0 0.0
        %941 = vmatprep.subr.mxu0 0.0
        %942 = vmatpush1.msra.mxu0 0.0
        %943 = vmatprep.subr.mxu0 0.0
        %944 = vmatpush1.msra.mxu0 0.0
        %945 = vmatprep.subr.mxu0 0.0
        %946 = vmatpush1.msra.mxu0 0.0
        %947 = vmatprep.mubr.f32.mxu0 0.0
        %948 = vmatmul.mubr.f32.gmra.mrb[0].mxu0 %v881
        %v949 = vpop.f32.mrb[0].mxu0
        %v950 = vadd.f32 %v878, %v949
        %v951 = vpop.f32.mrb[0].mxu0
        %v952 = vadd.f32 %v878, %v951
        %953 = vdwg.mxu0
        %954 = vmatprep.subr.mxu0 0.0
        %955 = vmatpush1.msra.mxu0 %v867
        %956 = vmatprep.subr.mxu0 0.0
        %957 = vmatpush1.msra.mxu0 0.0
        %958 = vmatprep.subr.mxu0 0.0
        %959 = vmatpush1.msra.mxu0 0.0
        %960 = vmatprep.subr.mxu0 0.0
        %961 = vmatpush1.msra.mxu0 0.0
        %962 = vmatprep.subr.mxu0 0.0
        %963 = vmatpush1.msra.mxu0 0.0
        %964 = vmatprep.subr.mxu0 0.0
        %965 = vmatpush1.msra.mxu0 0.0
        %966 = vmatprep.subr.mxu0 0.0
        %967 = vmatpush1.msra.mxu0 0.0
        %968 = vmatprep.subr.mxu0 0.0
        %969 = vmatpush1.msra.mxu0 0.0
        %970 = vmatprep.subr.mxu0 0.0
        %971 = vmatpush1.msra.mxu0 0.0
        %972 = vmatprep.subr.mxu0 0.0
        %973 = vmatpush1.msra.mxu0 0.0
        %974 = vmatprep.subr.mxu0 0.0
        %975 = vmatpush1.msra.mxu0 0.0
        %976 = vmatprep.subr.mxu0 0.0
        %977 = vmatpush1.msra.mxu0 0.0
        %978 = vmatprep.subr.mxu0 0.0
        %979 = vmatpush1.msra.mxu0 0.0
        %980 = vmatprep.subr.mxu0 0.0
        %981 = vmatpush1.msra.mxu0 0.0
        %982 = vmatprep.subr.mxu0 0.0
        %983 = vmatpush1.msra.mxu0 0.0
        %984 = vmatprep.subr.mxu0 0.0
        %985 = vmatpush1.msra.mxu0 0.0
        %986 = vmatprep.subr.mxu0 0.0
        %987 = vmatpush1.msra.mxu0 0.0
        %988 = vmatprep.subr.mxu0 0.0
        %989 = vmatpush1.msra.mxu0 0.0
        %990 = vmatprep.subr.mxu0 0.0
        %991 = vmatpush1.msra.mxu0 0.0
        %992 = vmatprep.subr.mxu0 0.0
        %993 = vmatpush1.msra.mxu0 0.0
        %994 = vmatprep.subr.mxu0 0.0
        %995 = vmatpush1.msra.mxu0 0.0
        %996 = vmatprep.subr.mxu0 0.0
        %997 = vmatpush1.msra.mxu0 0.0
        %998 = vmatprep.subr.mxu0 0.0
        %999 = vmatpush1.msra.mxu0 0.0
        %1000 = vmatprep.subr.mxu0 0.0
        %1001 = vmatpush1.msra.mxu0 0.0
        %1002 = vmatprep.subr.mxu0 0.0
        %1003 = vmatpush1.msra.mxu0 0.0
        %1004 = vmatprep.subr.mxu0 0.0
        %1005 = vmatpush1.msra.mxu0 0.0
        %1006 = vmatprep.subr.mxu0 0.0
        %1007 = vmatpush1.msra.mxu0 0.0
        %1008 = vmatprep.subr.mxu0 0.0
        %1009 = vmatpush1.msra.mxu0 0.0
        %1010 = vmatprep.subr.mxu0 0.0
        %1011 = vmatpush1.msra.mxu0 0.0
        %1012 = vmatprep.subr.mxu0 0.0
        %1013 = vmatpush1.msra.mxu0 0.0
        %1014 = vmatprep.subr.mxu0 0.0
        %1015 = vmatpush1.msra.mxu0 0.0
        %1016 = vmatprep.subr.mxu0 0.0
        %1017 = vmatpush1.msra.mxu0 0.0
        %1018 = vmatprep.mubr.f32.mxu0 0.0
        %1019 = vmatmul.mubr.f32.gmra.mrb[0].mxu0 %v881
        %v1020 = vpop.f32.mrb[0].mxu0
        %v1021 = vadd.f32 %v878, %v1020
        %v1022 = vpop.f32.mrb[0].mxu0
        %1023 = vdwg.mxu0
        %v1024 = vmul.f32 %v950, 0.5
        %v1025 = vmul.f32 %v952, 0.5
        %v1026 = vmul.f32 %v1021, 0.5
        %v1027 = vtanh.pop %v1024
        %v1028 = vtanh.pop %v1025
        %v1029 = vtanh.pop %v1026
        %v1030 = vmul.f32 %v1027, 0.5
        %v1031 = vmul.f32 %v1028, 0.5
        %v1032 = vmul.f32 %v1029, 0.5
        %v1033 = vadd.f32 %v1030, 0.5
        %v1034 = vadd.f32 %v1031, 0.5
        %v1035 = vadd.f32 %v1032, 0.5
        %v1039 = vcombine.low %v1033, %v1034
        %v1041 = vunpack.c.l.s4 1966171168
        %v1042 = vunpack.c.0.s8 %v1041
        %v1043 = vlaneseq
        %v1044 = vshrl.u32 %v1043, 7
        %v1045 = vsub.s32 %v1042, %v1044
        %v1046 = vrot.slane %v1039, %v1045
        %v1048 = vunpack.c.l.s4 1966171168
        %v1049 = vunpack.c.0.s8 %v1048
        %v1050 = vlaneseq
        %v1051 = vshrl.u32 %v1050, 7
        %v1052 = vsub.s32 %v1049, %v1051
        %v1053 = vrot.slane %v1035, %v1052
        %v1054 = vcombine.low %v1046, %v1053
        %v1056 = vunpack.c.l.s4 1966171168
        %v1057 = vunpack.c.0.s8 %v1056
        %v1058 = vlaneseq
        %v1059 = vshrl.u32 %v1058, 7
        %v1060 = vsub.s32 %v1057, %v1059
        %v1061 = vrot.slane %v1054, %v1060
        %v1063 = vlaneseq
        %vm1064 = vcmp.ge.s32.totalorder %v1063, 0
        %vm1065 = vcmp.lt.s32.totalorder %v1063, 384
        %vm1066 = vmand %vm1064, %vm1065
        %1067 = vst.msk [vmem:[%s286] sm:$0x7] %vm1066, %v1061
        %s1068 = sand.u32 %s183, 1
        %s1069 = scalar_lea.sflag [#allocation4], %s1068
        %s1070 = sand.u32 %s183, 1
        %s1071 = smul.addr %s1070, 3
        %s1072 = scalar_lea.vmem [#allocation3], %s1071
        // Predicated region
        $region49: #{tpu_custom_call.1} parent=47 // pred_check
          %p1073 = pneg %p193
        $region50: #{tpu_custom_call.1} parent=47 // pred_check_branch
          %1075 = sbr.rel (%p1073) target = $region52
        $region51: #{tpu_custom_call.1} parent=47 // pred_region
          %s1076 = smul.u32 3, %s23
          %s1077 = ssub.s32 8, %s1076
          %p1078 = scmp.lt.s32.totalorder %s1077, 3
          %s1079 = scalar_select %p1078, %s1077, 3
          %s1080 = smul.u32 16, %s1079
          %s1082 = ssub.s32 48, %s1080
          %1083 = vsyncadd %s1069, %s1082
          %p1084 = scmp.ne.s32.totalorder 0, %s1080
          %s1085 = smul.addr %s1076, 16
          %s1086 = scalar_lea.hbm %s7, %s1085
          %s1087 = sshll.u32 %s1079, 4
          %s1088 = sshll.u32 %s1072, 4
          %s1089 = int_to_ptr.vmem [resolvable:$true] %s1088
          %1091 = dma.vmem_to_hbm [thread:$0]  (%p1084), %s1089, %s1087, %s1086, %s1069
        $region52: #{tpu_custom_call.1} parent=47 // pred_fallthru
          _
      $region48: #{tpu_custom_call.1} parent=5 // pred_fallthru
        _
      %p1092 = scmp.le.s32.totalorder 2, %s18
      // Predicated region
      $region53: #{tpu_custom_call.1} parent=5 // pred_check
        %p1093 = pneg %p1092
      $region54: #{tpu_custom_call.1} parent=5 // pred_check_branch
        %1095 = sbr.rel (%p1093) target = $region56
      $region55: #{tpu_custom_call.1} parent=5 // pred_region
        %s1096 = ssub.s32 %s18, 2
        // Predicated region
        $region57: #{tpu_custom_call.1} parent=55 // pred_check
          %p1097 = pneg %p199
        $region58: #{tpu_custom_call.1} parent=55 // pred_check_branch
          %1099 = sbr.rel (%p1097) target = $region60
        $region59: #{tpu_custom_call.1} parent=55 // pred_region
          %s1100 = sand.u32 %s184, 1
          %s1101 = scalar_lea.sflag [#allocation4], %s1100
          %s1102 = sand.u32 %s184, 1
          %s1103 = smul.addr %s1102, 3
          %s1104 = scalar_lea.vmem [#allocation3], %s1103
          %1105 = dma.done %s1101, 48
        $region60: #{tpu_custom_call.1} parent=55 // pred_fallthru
          _
      $region56: #{tpu_custom_call.1} parent=5 // pred_fallthru
        _
    $region6: #{tpu_custom_call.1} parent=1 // loop_footer
      %s22 = sadd.s32 1, %s18
    $region7: #{tpu_custom_call.1} parent=1 // loop_footer_branch
      %17 = sbr.rel target = $region3
    $region8: #{tpu_custom_call.1} parent=1 // loop_exit
      _
    %1106 = vsyncpa [#allocation4], 1
    %s1107 = scalar_lea.sflag [#allocation4], 1
    %1108 = vsyncpa %s1107, 1

</llo_original>
